<compile_context>
chip_gen: v7x
topology: tpu7x:2x2x1
jax: 0.10.0
libtpu: 0.0.40
codegen_flags: <defaults>
</compile_context>

<pallas_src>
import functools
from types import SimpleNamespace

import jax
import jax.numpy as jnp
from jax.experimental import pallas as pl
from jax.experimental.pallas import tpu as pltpu


# ----------------------------------------------------------------------------
# small helpers
# ----------------------------------------------------------------------------
def _round_up(x, m):
    return ((x + m - 1) // m) * m


def _pick_tile(n, candidates):
    for c in candidates:
        if c <= n and n % c == 0:
            return c
    return n


def _pad2(x, rows, cols, dtype=None):
    dtype = x.dtype if dtype is None else dtype
    out = jnp.zeros((rows, cols), dtype)
    return out.at[: x.shape[0], : x.shape[1]].set(x.astype(dtype))


# ----------------------------------------------------------------------------
# Pallas kernels
# ----------------------------------------------------------------------------
def _transform_kernel(x_ref, w_ref, o_ref):
    """Per-node feature transform: O = X @ W (row tile)."""
    o_ref[...] = jnp.dot(
        x_ref[...], w_ref[...], preferred_element_type=jnp.float32
    ).astype(o_ref.dtype)


def _aggregate_kernel(a_ref, y_ref, b_ref, o_ref, acc_ref, *, apply_relu):
    """O = (relu?)(A @ Y + b) — row tile i, reduction over K tiles k."""
    k = pl.program_id(1)

    @pl.when(k == 0)
    def _():
        acc_ref[...] = jnp.zeros_like(acc_ref)

    acc_ref[...] += jnp.dot(
        a_ref[...], y_ref[...], preferred_element_type=jnp.float32
    )

    @pl.when(k == pl.num_programs(1) - 1)
    def _():
        r = acc_ref[...] + b_ref[...]
        if apply_relu:
            r = jnp.maximum(r, 0.0)
        o_ref[...] = r.astype(o_ref.dtype)


def _aggregate_relu_matmul_kernel(a_ref, y_ref, b_ref, w_ref, o_ref, acc_ref):
    """O = relu(A @ Y + b) @ W — layer-1 aggregate fused with layer-2 transform."""
    k = pl.program_id(1)

    @pl.when(k == 0)
    def _():
        acc_ref[...] = jnp.zeros_like(acc_ref)

    acc_ref[...] += jnp.dot(
        a_ref[...], y_ref[...], preferred_element_type=jnp.float32
    )

    @pl.when(k == pl.num_programs(1) - 1)
    def _():
        h = jnp.maximum(acc_ref[...] + b_ref[...], 0.0).astype(w_ref.dtype)
        o_ref[...] = jnp.dot(
            h, w_ref[...], preferred_element_type=jnp.float32
        ).astype(o_ref.dtype)


# ----------------------------------------------------------------------------
# pallas_call wrappers
# ----------------------------------------------------------------------------
def _gcn_transform(x, w, *, out_dtype, tm):
    n_pad, c_in = x.shape
    c_out = w.shape[1]
    return pl.pallas_call(
        _transform_kernel,
        grid=(n_pad // tm,),
        in_specs=[
            pl.BlockSpec((tm, c_in), lambda i: (i, 0)),
            pl.BlockSpec((c_in, c_out), lambda i: (0, 0)),   # weight resident
        ],
        out_specs=pl.BlockSpec((tm, c_out), lambda i: (i, 0)),
        out_shape=jax.ShapeDtypeStruct((n_pad, c_out), out_dtype),
        compiler_params=pltpu.CompilerParams(
            dimension_semantics=("parallel",)),
    )(x, w)


def _gcn_aggregate(a, y, b, *, w=None, apply_relu=True, out_dtype, tm, tk):
    n_pad = a.shape[0]
    c_in = y.shape[1]
    c_out = c_in if w is None else w.shape[1]
    grid = (n_pad // tm, n_pad // tk)

    in_specs = [
        pl.BlockSpec((tm, tk), lambda i, k: (i, k)),       # A tile, streamed
        pl.BlockSpec((tk, c_in), lambda i, k: (k, 0)),     # Y K-slab
        pl.BlockSpec((1, c_in), lambda i, k: (0, 0)),      # bias, resident
    ]
    inputs = [a, y, b]
    if w is None:
        kernel = functools.partial(_aggregate_kernel, apply_relu=apply_relu)
    else:
        in_specs.append(pl.BlockSpec((c_in, c_out), lambda i, k: (0, 0)))
        inputs.append(w)
        kernel = _aggregate_relu_matmul_kernel

    flops = 2 * n_pad * n_pad * c_in
    if w is not None:
        flops += 2 * n_pad * c_in * c_out
    bytes_accessed = (
        a.size * a.dtype.itemsize
        + y.size * y.dtype.itemsize
        + n_pad * c_out * jnp.dtype(out_dtype).itemsize
    )

    return pl.pallas_call(
        kernel,
        grid=grid,
        in_specs=in_specs,
        out_specs=pl.BlockSpec((tm, c_out), lambda i, k: (i, 0)),
        out_shape=jax.ShapeDtypeStruct((n_pad, c_out), out_dtype),
        scratch_shapes=[pltpu.VMEM((tm, c_in), jnp.float32)],
        compiler_params=pltpu.CompilerParams(
            dimension_semantics=("parallel", "arbitrary")),
        cost_estimate=pl.CostEstimate(
            flops=flops, transcendentals=0, bytes_accessed=bytes_accessed),
    )(*inputs)


# ----------------------------------------------------------------------------
# JAX glue: GCN normalized adjacency from edge_index (scatter, self loops)
# ----------------------------------------------------------------------------
def gcn_normalized_adjacency(edge_index, num_nodes):
    """A_hat = D^{-1/2} (A + I) D^{-1/2}, dense [N, N] f32.

    edge_index is [2, E] with row 0 = source, row 1 = target (PyG convention);
    duplicate edges are counted multiply (matches uncoalesced gcn_norm).
    """
    src = edge_index[0]
    dst = edge_index[1]
    loop = jnp.arange(num_nodes, dtype=edge_index.dtype)
    src = jnp.concatenate([src, loop])
    dst = jnp.concatenate([dst, loop])
    a = jnp.zeros((num_nodes, num_nodes), jnp.float32)
    a = a.at[dst, src].add(1.0)                     # A[i, j] = edge j -> i (incl. self)
    deg = a.sum(axis=1)
    d_inv_sqrt = jnp.where(deg > 0, 1.0 / jnp.sqrt(deg), 0.0)
    return d_inv_sqrt[:, None] * a * d_inv_sqrt[None, :]


# ----------------------------------------------------------------------------
# Encoder wrapper
# ----------------------------------------------------------------------------
def init_encoder_params(key, in_channels, out_channels, model):
    """Deterministic glorot-uniform weights, zero biases (GCNConv defaults)."""
    def glorot(k, fan_in, fan_out):
        lim = jnp.sqrt(6.0 / (fan_in + fan_out))
        return jax.random.uniform(k, (fan_in, fan_out), jnp.float32, -lim, lim)

    k1, k2, k3 = jax.random.split(key, 3)
    hid = 2 * out_channels
    params = {
        "w1": glorot(k1, in_channels, hid),
        "b1": jnp.zeros((1, hid), jnp.float32),
    }
    if model == "GAE":
        params["w2"] = glorot(k2, hid, out_channels)
        params["b2"] = jnp.zeros((1, out_channels), jnp.float32)
    else:  # VGAE
        params["w_mu"] = glorot(k2, hid, out_channels)
        params["b_mu"] = jnp.zeros((1, out_channels), jnp.float32)
        params["w_lv"] = glorot(k3, hid, out_channels)
        params["b_lv"] = jnp.zeros((1, out_channels), jnp.float32)
    return params


def encoder_forward(args, params, x, edge_index):
    n, c_in = x.shape
    hid = params["w1"].shape[1]

    if args.model == "GAE":
        w_heads = params["w2"]
        b_heads = params["b2"]
    else:  # VGAE: fuse mu|logvar heads into one wider matmul (one A pass)
        w_heads = jnp.concatenate([params["w_mu"], params["w_lv"]], axis=1)
        b_heads = jnp.concatenate([params["b_mu"], params["b_lv"]], axis=1)
    out_cat = w_heads.shape[1]

    # --- pad to TPU-friendly shapes: lanes (channels) -> x128, nodes -> x128 ---
    n_pad = _round_up(max(n, 8), 128)
    cin_pad = _round_up(c_in, 128)
    hid_pad = _round_up(hid, 128)
    oc_pad = _round_up(out_cat, 128)

    tm = _pick_tile(n_pad, (256, 128))        # row tile (parallel across TCs)
    tk = _pick_tile(n_pad, (512, 256, 128))   # reduction tile over A columns

    a_hat = gcn_normalized_adjacency(edge_index, n)
    a_pad = _pad2(a_hat, n_pad, n_pad, jnp.bfloat16)   # bf16: half the HBM traffic
    x_pad = _pad2(x.astype(jnp.float32), n_pad, cin_pad)
    w1_pad = _pad2(params["w1"], cin_pad, hid_pad)
    b1_pad = _pad2(params["b1"], 1, hid_pad)
    wh_pad = _pad2(w_heads, hid_pad, oc_pad, jnp.bfloat16)
    bh_pad = _pad2(b_heads, 1, oc_pad)

    # Pass 1: per-node transform  XW1 = X @ W1  (bf16 operand for the A-stream)
    xw1 = _gcn_transform(x_pad, w1_pad, out_dtype=jnp.bfloat16, tm=tm)

    # Pass 2: HW = relu(A @ XW1 + b1) @ Wheads   (A streamed, f32 accumulate)
    hw = _gcn_aggregate(a_pad, xw1, b1_pad, w=wh_pad,
                        out_dtype=jnp.bfloat16, tm=tm, tk=tk)

    # Pass 3: Z = A @ HW + bheads
    z = _gcn_aggregate(a_pad, hw, bh_pad, w=None, apply_relu=False,
                       out_dtype=jnp.float32, tm=tm, tk=tk)

    if args.model == "GAE":
        return z[:n, :out_cat]
    out = out_cat // 2
    return z[:n, :out], z[:n, out:out_cat]


# ----------------------------------------------------------------------------
# Reference (plain JAX, f32) for sanity checking
# ----------------------------------------------------------------------------
def encoder_reference(args, params, x, edge_index):
    a_hat = gcn_normalized_adjacency(edge_index, x.shape[0])
    h = jnp.maximum(a_hat @ (x @ params["w1"]) + params["b1"], 0.0)
    if args.model == "GAE":
        return a_hat @ (h @ params["w2"]) + params["b2"]
    mu = a_hat @ (h @ params["w_mu"]) + params["b_mu"]
    lv = a_hat @ (h @ params["w_lv"]) + params["b_lv"]
    return mu, lv


# ----------------------------------------------------------------------------
if __name__ == "__main__":
    key = jax.random.PRNGKey(0)
    kx, kp_vgae, kp_gae = jax.random.split(key, 3)

    num_nodes, in_channels, out_channels = 8, 16, 8

    # Small undirected ring graph: edges in both directions.
    fwd = jnp.stack([jnp.arange(8), (jnp.arange(8) + 1) % 8])           # i -> i+1
    bwd = jnp.stack([(jnp.arange(8) + 1) % 8, jnp.arange(8)])           # i+1 -> i
    edge_index = jnp.concatenate([fwd, bwd], axis=1).astype(jnp.int32)  # [2, 16]

    x = jax.random.normal(kx, (num_nodes, in_channels), jnp.float32)

    # bf16 A_hat / intermediates -> compare against f32 reference with ~1e-2 slack
    ATOL, RTOL = 2e-2, 5e-2

    # VGAE branch
    args_vgae = SimpleNamespace(model="VGAE")
    p_vgae = init_encoder_params(kp_vgae, in_channels, out_channels, "VGAE")
    mu, logvar = encoder_forward(args_vgae, p_vgae, x, edge_index)
    jax.block_until_ready((mu, logvar))
    mu_ref, lv_ref = encoder_reference(args_vgae, p_vgae, x, edge_index)
    assert mu.shape == (num_nodes, out_channels)
    assert logvar.shape == (num_nodes, out_channels)
    assert jnp.allclose(mu, mu_ref, atol=ATOL, rtol=RTOL)
    assert jnp.allclose(logvar, lv_ref, atol=ATOL, rtol=RTOL)

    # GAE branch
    args_gae = SimpleNamespace(model="GAE")
    p_gae = init_encoder_params(kp_gae, in_channels, out_channels, "GAE")
    z = encoder_forward(args_gae, p_gae, x, edge_index)
    jax.block_until_ready(z)
    z_ref = encoder_reference(args_gae, p_gae, x, edge_index)
    assert z.shape == (num_nodes, out_channels)
    assert jnp.allclose(z, z_ref, atol=ATOL, rtol=RTOL)

    print("KERNEL_OK")
</pallas_src>

<mosaic_0001>
module attributes {stable_mosaic.version = 11 : i64} {
  func.func @_transform_kernel(%arg0: i32, %arg1: memref<128x128xf32, #tpu.memory_space<vmem>>, %arg2: memref<128x128xf32, #tpu.memory_space<vmem>>, %arg3: memref<128x128xbf16, #tpu.memory_space<vmem>>) attributes {dimension_semantics = [#tpu.dimension_semantics<parallel>], iteration_bounds = array<i64: 1>, scalar_prefetch = 0 : i64, scratch_operands = 0 : i64, tpu.core_type = #tpu.core_type<tc>, window_params = [{transform_indices = @transform_0, window_bounds = array<i64: 128, 128>}, {pipeline_mode = #tpu.pipeline_mode<synchronous>, transform_indices = @transform_1, window_bounds = array<i64: 128, 128>}, {transform_indices = @transform_2, window_bounds = array<i64: 128, 128>}]} {
    %c0 = arith.constant 0 : index
    %c0_0 = arith.constant 0 : index
    %0 = vector.load %arg1[%c0, %c0_0] : memref<128x128xf32, #tpu.memory_space<vmem>>, vector<128x128xf32>
    %c0_1 = arith.constant 0 : index
    %c0_2 = arith.constant 0 : index
    %1 = vector.load %arg2[%c0_1, %c0_2] : memref<128x128xf32, #tpu.memory_space<vmem>>, vector<128x128xf32>
    %cst = arith.constant dense<0.000000e+00> : vector<128x128xf32>
    %2 = tpu.matmul %0, %1, %cst {dimension_numbers = #tpu.dot_dimension_numbers<[1], [0], [0], [1], [0, 0, 1, 1], [], []>} : vector<128x128xf32>, vector<128x128xf32>, vector<128x128xf32> -> vector<128x128xf32>
    %3 = arith.truncf %2 : vector<128x128xf32> to vector<128x128xbf16>
    %c0_3 = arith.constant 0 : index
    %c0_4 = arith.constant 0 : index
    %4 = vector.load %arg3[%c0_3, %c0_4] : memref<128x128xbf16, #tpu.memory_space<vmem>>, vector<128x128xbf16>
    tpu.vector_store %arg3[%c0_3, %c0_4], %3 {strides = array<i32>} : memref<128x128xbf16, #tpu.memory_space<vmem>>, vector<128x128xbf16>,
    return
  }
  func.func @transform_0(%arg0: i32) -> (i32, i32) {
    %c0_i32 = arith.constant 0 : i32
    %c0_i32_0 = arith.constant 0 : i32
    return %arg0, %c0_i32 : i32, i32
  }
  func.func @transform_1(%arg0: i32) -> (i32, i32) {
    %c0_i32 = arith.constant 0 : i32
    %c0_i32_0 = arith.constant 0 : i32
    %c0_i32_1 = arith.constant 0 : i32
    return %c0_i32, %c0_i32_0 : i32, i32
  }
  func.func @transform_2(%arg0: i32) -> (i32, i32) {
    %c0_i32 = arith.constant 0 : i32
    %c0_i32_0 = arith.constant 0 : i32
    return %arg0, %c0_i32 : i32, i32
  }
}

</mosaic_0001>

<llo_original>
// kernel: tpu_custom_call.1
$region0: #{tpu_custom_call.1}
  #allocation0 [shape = 'u32[]', space=smem, size = 0x4, offset = 0x4, fixed_abs, tag = 'smem constant byte address 0x4 - core index']
  #allocation1 [shape = 'u32[144,128]{1,0:T(1,128)}', space=vmem, size = 0x12000, scoped, tag = 'internal scratch']
  %s0 = inlined_call_operand.hbm [shape: f32[128,128], index: 0, kind: input, shape index: {}]
  %s1 = inlined_call_operand.hbm [shape: f32[128,128], index: 1, kind: input, shape index: {}]
  %s2 = inlined_call_operand.hbm [shape: bf16[128,128], index: 2, kind: output, shape index: {}]
  %s3 = sld [smem:[#allocation0]]
  $region26: #{tpu_custom_call.1} parent=0
    _
  %s5 = ssub.s32 1, %s3
  %s6 = scalar_select 0, %s5, %s3
  $region1: #{tpu_custom_call.1} parent=0
    #allocation2 [shape = 'u8[65536]{0}', space=vmem, size = 0x10000, scoped, tag = 'input window, operand 0, single buffered']
    #allocation3 [shape = 's32[1]{0}', space=sflag, size = 0x4, scoped, tag = 'scoped memory for tpu_custom_call.1']
    #allocation4 [shape = 's32[1]{0}', space=sflag, size = 0x4, scoped, tag = 'scoped memory for tpu_custom_call.1']
    #allocation5 [shape = 'u8[65536]{0}', space=vmem, size = 0x10000, scoped, tag = 'input window, operand 1, single buffered']
    #allocation6 [shape = 's32[1]{0}', space=sflag, size = 0x4, scoped, tag = 'scoped memory for tpu_custom_call.1']
    #allocation7 [shape = 'u8[32768]{0}', space=vmem, size = 0x8000, scoped, tag = 'output window, operand 0, single buffered']
    %7 = vsyncpa [#allocation3], 0
    %8 = vsyncpa [#allocation6], 0
    %9 = vsyncpa [#allocation4], 0
    // Predicated region
    $region2: #{tpu_custom_call.1} parent=1 // pred_check
      _
    $region3: #{tpu_custom_call.1} parent=1 // pred_check_branch
      %11 = sbr.rel (0) target = $region5
    $region4: #{tpu_custom_call.1} parent=1 // pred_region
      %s13 = ssub.s32 2048, 2048
      %14 = vsyncadd [#allocation3], %s13
      %s15 = sshll.u32 [#allocation2], 4
      %s16 = int_to_ptr.vmem [resolvable:$true] %s15
      %21 = dma.hbm_to_vmem [thread:$0]  %s0, 2048, %s16, [#allocation3], 128, 128, 8
    $region5: #{tpu_custom_call.1} parent=1 // pred_fallthru
      _
    // Predicated region
    $region6: #{tpu_custom_call.1} parent=1 // pred_check
      _
    $region7: #{tpu_custom_call.1} parent=1 // pred_check_branch
      %23 = sbr.rel (0) target = $region9
    $region8: #{tpu_custom_call.1} parent=1 // pred_region
      %s25 = ssub.s32 2048, 2048
      %26 = vsyncadd [#allocation6], %s25
      %s27 = sshll.u32 [#allocation5], 4
      %s28 = int_to_ptr.vmem [resolvable:$true] %s27
      %33 = dma.hbm_to_vmem [thread:$0]  %s1, 2048, %s28, [#allocation6], 128, 128, 8
    $region9: #{tpu_custom_call.1} parent=1 // pred_fallthru
      _
    // Predicated region
    $region10: #{tpu_custom_call.1} parent=1 // pred_check
      _
    $region11: #{tpu_custom_call.1} parent=1 // pred_check_branch
      %35 = sbr.rel (0) target = $region13
    $region12: #{tpu_custom_call.1} parent=1 // pred_region
      %36 = dma.done [#allocation3], 2048
    $region13: #{tpu_custom_call.1} parent=1 // pred_fallthru
      _
    // Predicated region
    $region14: #{tpu_custom_call.1} parent=1 // pred_check
      _
    $region15: #{tpu_custom_call.1} parent=1 // pred_check_branch
      %38 = sbr.rel (0) target = $region17
    $region16: #{tpu_custom_call.1} parent=1 // pred_region
      %39 = dma.done [#allocation6], 2048
    $region17: #{tpu_custom_call.1} parent=1 // pred_fallthru
      _
    %v40 = vld [vmem:[#allocation2] sm:$0xff]
    %v41 = vld [vmem:[#allocation2 + $0x8] sm:$0xff]
    %v42 = vld [vmem:[#allocation2 + $0x10] sm:$0xff]
    %v43 = vld [vmem:[#allocation2 + $0x18] sm:$0xff]
    %v44 = vld [vmem:[#allocation2 + $0x20] sm:$0xff]
    %v45 = vld [vmem:[#allocation2 + $0x28] sm:$0xff]
    %v46 = vld [vmem:[#allocation2 + $0x30] sm:$0xff]
    %v47 = vld [vmem:[#allocation2 + $0x38] sm:$0xff]
    %v48 = vld [vmem:[#allocation2 + $0x40] sm:$0xff]
    %v49 = vld [vmem:[#allocation2 + $0x48] sm:$0xff]
    %v50 = vld [vmem:[#allocation2 + $0x50] sm:$0xff]
    %v51 = vld [vmem:[#allocation2 + $0x58] sm:$0xff]
    %v52 = vld [vmem:[#allocation2 + $0x60] sm:$0xff]
    %v53 = vld [vmem:[#allocation2 + $0x68] sm:$0xff]
    %v54 = vld [vmem:[#allocation2 + $0x70] sm:$0xff]
    %v55 = vld [vmem:[#allocation2 + $0x78] sm:$0xff]
    %v56 = vld [vmem:[#allocation5] sm:$0xff]
    %v57 = vld [vmem:[#allocation5 + $0x8] sm:$0xff]
    %v58 = vld [vmem:[#allocation5 + $0x10] sm:$0xff]
    %v59 = vld [vmem:[#allocation5 + $0x18] sm:$0xff]
    %v60 = vld [vmem:[#allocation5 + $0x20] sm:$0xff]
    %v61 = vld [vmem:[#allocation5 + $0x28] sm:$0xff]
    %v62 = vld [vmem:[#allocation5 + $0x30] sm:$0xff]
    %v63 = vld [vmem:[#allocation5 + $0x38] sm:$0xff]
    %v64 = vld [vmem:[#allocation5 + $0x40] sm:$0xff]
    %v65 = vld [vmem:[#allocation5 + $0x48] sm:$0xff]
    %v66 = vld [vmem:[#allocation5 + $0x50] sm:$0xff]
    %v67 = vld [vmem:[#allocation5 + $0x58] sm:$0xff]
    %v68 = vld [vmem:[#allocation5 + $0x60] sm:$0xff]
    %v69 = vld [vmem:[#allocation5 + $0x68] sm:$0xff]
    %v70 = vld [vmem:[#allocation5 + $0x70] sm:$0xff]
    %v71 = vld [vmem:[#allocation5 + $0x78] sm:$0xff]
    %72 = vmatprep.subr.mxu0 0.0
    %73 = vmatpush1.msra.mxu0 %v56
    %74 = vmatprep.subr.mxu0 0.0
    %75 = vmatpush1.msra.mxu0 %v57
    %76 = vmatprep.subr.mxu0 0.0
    %77 = vmatpush1.msra.mxu0 %v58
    %78 = vmatprep.subr.mxu0 0.0
    %79 = vmatpush1.msra.mxu0 %v59
    %80 = vmatprep.subr.mxu0 0.0
    %81 = vmatpush1.msra.mxu0 %v60
    %82 = vmatprep.subr.mxu0 0.0
    %83 = vmatpush1.msra.mxu0 %v61
    %84 = vmatprep.subr.mxu0 0.0
    %85 = vmatpush1.msra.mxu0 %v62
    %86 = vmatprep.subr.mxu0 0.0
    %87 = vmatpush1.msra.mxu0 %v63
    %88 = vmatprep.subr.mxu0 0.0
    %89 = vmatpush1.msra.mxu0 %v64
    %90 = vmatprep.subr.mxu0 0.0
    %91 = vmatpush1.msra.mxu0 %v65
    %92 = vmatprep.subr.mxu0 0.0
    %93 = vmatpush1.msra.mxu0 %v66
    %94 = vmatprep.subr.mxu0 0.0
    %95 = vmatpush1.msra.mxu0 %v67
    %96 = vmatprep.subr.mxu0 0.0
    %97 = vmatpush1.msra.mxu0 %v68
    %98 = vmatprep.subr.mxu0 0.0
    %99 = vmatpush1.msra.mxu0 %v69
    %100 = vmatprep.subr.mxu0 0.0
    %101 = vmatpush1.msra.mxu0 %v70
    %102 = vmatprep.subr.mxu0 0.0
    %103 = vmatpush1.msra.mxu0 %v71
    %104 = vmatprep.subr.mxu0 0.0
    %105 = vmatpush1.msra.mxu0 0.0
    %106 = vmatprep.subr.mxu0 0.0
    %107 = vmatpush1.msra.mxu0 0.0
    %108 = vmatprep.subr.mxu0 0.0
    %109 = vmatpush1.msra.mxu0 0.0
    %110 = vmatprep.subr.mxu0 0.0
    %111 = vmatpush1.msra.mxu0 0.0
    %112 = vmatprep.subr.mxu0 0.0
    %113 = vmatpush1.msra.mxu0 0.0
    %114 = vmatprep.subr.mxu0 0.0
    %115 = vmatpush1.msra.mxu0 0.0
    %116 = vmatprep.subr.mxu0 0.0
    %117 = vmatpush1.msra.mxu0 0.0
    %118 = vmatprep.subr.mxu0 0.0
    %119 = vmatpush1.msra.mxu0 0.0
    %120 = vmatprep.subr.mxu0 0.0
    %121 = vmatpush1.msra.mxu0 0.0
    %122 = vmatprep.subr.mxu0 0.0
    %123 = vmatpush1.msra.mxu0 0.0
    %124 = vmatprep.subr.mxu0 0.0
    %125 = vmatpush1.msra.mxu0 0.0
    %126 = vmatprep.subr.mxu0 0.0
    %127 = vmatpush1.msra.mxu0 0.0
    %128 = vmatprep.subr.mxu0 0.0
    %129 = vmatpush1.msra.mxu0 0.0
    %130 = vmatprep.subr.mxu0 0.0
    %131 = vmatpush1.msra.mxu0 0.0
    %132 = vmatprep.subr.mxu0 0.0
    %133 = vmatpush1.msra.mxu0 0.0
    %134 = vmatprep.subr.mxu0 0.0
    %135 = vmatpush1.msra.mxu0 0.0
    %136 = vmatprep.mubr.f32.mxu0 0.0
    %137 = vmatmul.mubr.f32.gmra.mrb[0].mxu0 %v40
    %v138 = vpop.f32.mrb[0].mxu0
    %v139 = vadd.f32 0.0, %v138
    %v140 = vpop.f32.mrb[0].mxu0
    %141 = vmatprep.mubr.f32.mxu0 0.0
    %142 = vmatmul.mubr.f32.gmra.mrb[0].mxu0 %v41
    %v143 = vpop.f32.mrb[0].mxu0
    %v144 = vadd.f32 0.0, %v143
    %v145 = vpop.f32.mrb[0].mxu0
    %146 = vmatprep.mubr.f32.mxu0 0.0
    %147 = vmatmul.mubr.f32.gmra.mrb[0].mxu0 %v42
    %v148 = vpop.f32.mrb[0].mxu0
    %v149 = vadd.f32 0.0, %v148
    %v150 = vpop.f32.mrb[0].mxu0
    %151 = vmatprep.mubr.f32.mxu0 0.0
    %152 = vmatmul.mubr.f32.gmra.mrb[0].mxu0 %v43
    %v153 = vpop.f32.mrb[0].mxu0
    %v154 = vadd.f32 0.0, %v153
    %v155 = vpop.f32.mrb[0].mxu0
    %156 = vmatprep.mubr.f32.mxu0 0.0
    %157 = vmatmul.mubr.f32.gmra.mrb[0].mxu0 %v44
    %v158 = vpop.f32.mrb[0].mxu0
    %v159 = vadd.f32 0.0, %v158
    %v160 = vpop.f32.mrb[0].mxu0
    %161 = vmatprep.mubr.f32.mxu0 0.0
    %162 = vmatmul.mubr.f32.gmra.mrb[0].mxu0 %v45
    %v163 = vpop.f32.mrb[0].mxu0
    %v164 = vadd.f32 0.0, %v163
    %v165 = vpop.f32.mrb[0].mxu0
    %166 = vmatprep.mubr.f32.mxu0 0.0
    %167 = vmatmul.mubr.f32.gmra.mrb[0].mxu0 %v46
    %v168 = vpop.f32.mrb[0].mxu0
    %v169 = vadd.f32 0.0, %v168
    %v170 = vpop.f32.mrb[0].mxu0
    %171 = vmatprep.mubr.f32.mxu0 0.0
    %172 = vmatmul.mubr.f32.gmra.mrb[0].mxu0 %v47
    %v173 = vpop.f32.mrb[0].mxu0
    %v174 = vadd.f32 0.0, %v173
    %v175 = vpop.f32.mrb[0].mxu0
    %176 = vmatprep.mubr.f32.mxu0 0.0
    %177 = vmatmul.mubr.f32.gmra.mrb[0].mxu0 %v48
    %v178 = vpop.f32.mrb[0].mxu0
    %v179 = vadd.f32 0.0, %v178
    %v180 = vpop.f32.mrb[0].mxu0
    %181 = vmatprep.mubr.f32.mxu0 0.0
    %182 = vmatmul.mubr.f32.gmra.mrb[0].mxu0 %v49
    %v183 = vpop.f32.mrb[0].mxu0
    %v184 = vadd.f32 0.0, %v183
    %v185 = vpop.f32.mrb[0].mxu0
    %186 = vmatprep.mubr.f32.mxu0 0.0
    %187 = vmatmul.mubr.f32.gmra.mrb[0].mxu0 %v50
    %v188 = vpop.f32.mrb[0].mxu0
    %v189 = vadd.f32 0.0, %v188
    %v190 = vpop.f32.mrb[0].mxu0
    %191 = vmatprep.mubr.f32.mxu0 0.0
    %192 = vmatmul.mubr.f32.gmra.mrb[0].mxu0 %v51
    %v193 = vpop.f32.mrb[0].mxu0
    %v194 = vadd.f32 0.0, %v193
    %v195 = vpop.f32.mrb[0].mxu0
    %196 = vmatprep.mubr.f32.mxu0 0.0
    %197 = vmatmul.mubr.f32.gmra.mrb[0].mxu0 %v52
    %v198 = vpop.f32.mrb[0].mxu0
    %v199 = vadd.f32 0.0, %v198
    %v200 = vpop.f32.mrb[0].mxu0
    %201 = vmatprep.mubr.f32.mxu0 0.0
    %202 = vmatmul.mubr.f32.gmra.mrb[0].mxu0 %v53
    %v203 = vpop.f32.mrb[0].mxu0
    %v204 = vadd.f32 0.0, %v203
    %v205 = vpop.f32.mrb[0].mxu0
    %206 = vmatprep.mubr.f32.mxu0 0.0
    %207 = vmatmul.mubr.f32.gmra.mrb[0].mxu0 %v54
    %v208 = vpop.f32.mrb[0].mxu0
    %v209 = vadd.f32 0.0, %v208
    %v210 = vpop.f32.mrb[0].mxu0
    %211 = vmatprep.mubr.f32.mxu0 0.0
    %212 = vmatmul.mubr.f32.gmra.mrb[0].mxu0 %v55
    %v213 = vpop.f32.mrb[0].mxu0
    %v214 = vadd.f32 0.0, %v213
    %v215 = vpop.f32.mrb[0].mxu0
    %216 = vdwg.mxu0
    %v217 = vpack.c.bf16 %v144, %v139
    %v218 = vpack.c.bf16 %v154, %v149
    %v219 = vpack.c.bf16 %v164, %v159
    %v220 = vpack.c.bf16 %v174, %v169
    %v221 = vpack.c.bf16 %v184, %v179
    %v222 = vpack.c.bf16 %v194, %v189
    %v223 = vpack.c.bf16 %v204, %v199
    %v224 = vpack.c.bf16 %v214, %v209
    %v233 = vunpack.c.l.b16 %v217
    %v234 = vunpack.c.h.b16 %v217
    %v235 = vunpack.c.l.b16 %v218
    %v236 = vunpack.c.h.b16 %v218
    %v237 = vunpack.c.l.b16 %v219
    %v238 = vunpack.c.h.b16 %v219
    %v239 = vunpack.c.l.b16 %v220
    %v240 = vunpack.c.h.b16 %v220
    %v241 = vunpack.c.l.b16 %v221
    %v242 = vunpack.c.h.b16 %v221
    %v243 = vunpack.c.l.b16 %v222
    %v244 = vunpack.c.h.b16 %v222
    %v245 = vunpack.c.l.b16 %v223
    %v246 = vunpack.c.h.b16 %v223
    %v247 = vunpack.c.l.b16 %v224
    %v248 = vunpack.c.h.b16 %v224
    %v249 = vpack.c.b16 %v233, %v233
    %v250 = vpack.c.b16 %v234, %v234
    %v251 = vpack.c.b16 %v235, %v235
    %v252 = vpack.c.b16 %v236, %v236
    %v253 = vpack.c.b16 %v237, %v237
    %v254 = vpack.c.b16 %v238, %v238
    %v255 = vpack.c.b16 %v239, %v239
    %v256 = vpack.c.b16 %v240, %v240
    %v257 = vpack.c.b16 %v241, %v241
    %v258 = vpack.c.b16 %v242, %v242
    %v259 = vpack.c.b16 %v243, %v243
    %v260 = vpack.c.b16 %v244, %v244
    %v261 = vpack.c.b16 %v245, %v245
    %v262 = vpack.c.b16 %v246, %v246
    %v263 = vpack.c.b16 %v247, %v247
    %v264 = vpack.c.b16 %v248, %v248
    %281 = vst [vmem:[#allocation7] sm:$0xf] %v249
    %282 = vst [vmem:[#allocation7 + $0x4] sm:$0xf] %v250
    %283 = vst [vmem:[#allocation7 + $0x8] sm:$0xf] %v251
    %284 = vst [vmem:[#allocation7 + $0xc] sm:$0xf] %v252
    %285 = vst [vmem:[#allocation7 + $0x10] sm:$0xf] %v253
    %286 = vst [vmem:[#allocation7 + $0x14] sm:$0xf] %v254
    %287 = vst [vmem:[#allocation7 + $0x18] sm:$0xf] %v255
    %288 = vst [vmem:[#allocation7 + $0x1c] sm:$0xf] %v256
    %289 = vst [vmem:[#allocation7 + $0x20] sm:$0xf] %v257
    %290 = vst [vmem:[#allocation7 + $0x24] sm:$0xf] %v258
    %291 = vst [vmem:[#allocation7 + $0x28] sm:$0xf] %v259
    %292 = vst [vmem:[#allocation7 + $0x2c] sm:$0xf] %v260
    %293 = vst [vmem:[#allocation7 + $0x30] sm:$0xf] %v261
    %294 = vst [vmem:[#allocation7 + $0x34] sm:$0xf] %v262
    %295 = vst [vmem:[#allocation7 + $0x38] sm:$0xf] %v263
    %296 = vst [vmem:[#allocation7 + $0x3c] sm:$0xf] %v264
    // Predicated region
    $region18: #{tpu_custom_call.1} parent=1 // pred_check
      _
    $region19: #{tpu_custom_call.1} parent=1 // pred_check_branch
      %298 = sbr.rel (0) target = $region21
    $region20: #{tpu_custom_call.1} parent=1 // pred_region
      %s300 = ssub.s32 1024, 1024
      %301 = vsyncadd [#allocation4], %s300
      %s302 = sshll.u32 [#allocation7], 4
      %s303 = int_to_ptr.vmem [resolvable:$true] %s302
      %308 = dma.vmem_to_hbm [thread:$0]  %s303, 1024, %s2, [#allocation4], 64, 64, 4
    $region21: #{tpu_custom_call.1} parent=1 // pred_fallthru
      _
    // Predicated region
    $region22: #{tpu_custom_call.1} parent=1 // pred_check
      _
    $region23: #{tpu_custom_call.1} parent=1 // pred_check_branch
      %310 = sbr.rel (0) target = $region25
    $region24: #{tpu_custom_call.1} parent=1 // pred_region
      %311 = dma.done [#allocation4], 1024
    $region25: #{tpu_custom_call.1} parent=1 // pred_fallthru
      _
    %312 = vsyncpa [#allocation3], 1
    %313 = vsyncpa [#allocation6], 1
    %314 = vsyncpa [#allocation4], 1

</llo_original>
